<compile_context>
chip_gen: v6e
topology: v6e:2x2x1
jax: 0.10.0
libtpu: 0.0.40
codegen_flags: <defaults>
</compile_context>

<pallas_src>
import math

import jax
import jax.numpy as jnp
from jax.experimental import pallas as pl
from jax.experimental.pallas import tpu as pltpu


def _build_pe_table(d_model: int, max_len: int, dtype=jnp.float32) -> jnp.ndarray:
    """Sinusoidal table, identical math to the PyTorch __init__. Shape (max_len, d_model)."""
    # TODO(synk): odd d_model is unsupported (PyTorch's 0::2 / 1::2 assignment
    # also breaks for odd d_model); guard instead of silently diverging.
    assert d_model % 2 == 0, "PositionEmbedding requires an even d_model"
    position = jnp.arange(0, max_len, dtype=jnp.float32)[:, None]            # (max_len, 1)
    div_term = jnp.exp(
        jnp.arange(0, d_model, 2, dtype=jnp.float32) * (-math.log(10000.0) / d_model)
    )                                                                         # (d_model//2,)
    ang = position * div_term                                                 # (max_len, d/2)
    pe = jnp.stack([jnp.sin(ang), jnp.cos(ang)], axis=-1).reshape(max_len, d_model)
    return pe.astype(dtype)


def _add_pe_kernel(x_ref, pe_ref, o_ref):
    # x_ref / o_ref: (TB, TS, Df); pe_ref: (TS, Df), broadcast over the batch tile.
    # Native-dtype add: kernel is HBM-bound, VALU has slack either way, and this
    # avoids doubling vreg pressure for packed bf16.
    o_ref[...] = x_ref[...] + pe_ref[...]


def _fold_factor(D: int) -> int:
    """Smallest F such that F*D is a multiple of 128 lanes."""
    return 1 if D % 128 == 0 else 128 // math.gcd(D, 128)


_TARGET_BLOCK_BYTES = 4 * 1024 * 1024   # per-step x block (review: 2-4 MiB sweet spot)
_MIN_SPLIT_BYTES = 256 * 1024           # only force >=2 grid steps above this


def _choose_tiles(B: int, Sf: int, Df: int, itemsize: int, sublane: int):
    """Pick (TB, TS): ~4 MiB per-step x block, sublane-aligned, >=2 steps when worthwhile."""
    row_bytes = Df * itemsize
    # Seq tile for one batch element, rounded to a sublane multiple.
    ts = max(sublane, (_TARGET_BLOCK_BYTES // max(1, row_bytes)) // sublane * sublane)
    ts = min(ts, pl.cdiv(Sf, sublane) * sublane)
    if ts >= Sf:
        # Whole (padded) sequence fits one tile -> grow the batch tile to hit the target.
        per_batch = ts * row_bytes
        tb = max(1, min(B, _TARGET_BLOCK_BYTES // max(1, per_batch)))
    else:
        tb = 1
    # v7x megacore: guarantee >= 2 parallel grid steps when there is enough data
    # for the split to beat the extra per-step overhead (v5e/v6e: harmless).
    if pl.cdiv(Sf, ts) * pl.cdiv(B, tb) < 2 and tb * ts * row_bytes >= _MIN_SPLIT_BYTES:
        if tb >= 2:
            tb = pl.cdiv(tb, 2)
        elif Sf > sublane:
            ts = max(sublane, pl.cdiv(pl.cdiv(Sf, 2), sublane) * sublane)
    return tb, ts


def _position_embedding_fwd(x: jnp.ndarray, pe: jnp.ndarray) -> jnp.ndarray:
    """x: (B, S, D), pe: (max_len, D)  ->  (B, S, D) = x + pe[None, :S]."""
    B, S, D = x.shape
    max_len, Dpe = pe.shape
    assert Dpe == D and S <= max_len

    # Force pe into the model dtype so an accidentally-f32 table never doubles
    # the pe HBM stream for a bf16 model (no-op when dtypes already match).
    pe = pe.astype(x.dtype)

    # Fold F consecutive sequence rows into the feature axis so the last dim is
    # a multiple of 128 lanes (full-vreg, unmasked stores). Pad S / max_len up
    # to a multiple of F when needed (cheap one-off copy; padded rows are
    # sliced off) instead of falling back to lane-sparse masked stores.
    F = _fold_factor(D)
    S_pad = pl.cdiv(S, F) * F
    if S_pad != S:
        x = jnp.pad(x, ((0, 0), (0, S_pad - S), (0, 0)))
    M_pad = pl.cdiv(max_len, F) * F
    if M_pad != max_len:
        pe = jnp.pad(pe, ((0, M_pad - max_len), (0, 0)))

    Sf, Mf, Df = S_pad // F, M_pad // F, D * F
    xf = x.reshape(B, Sf, Df)       # contiguous regrouping -> free
    pef = pe.reshape(Mf, Df)        # same grouping; rows [0, Sf) == pe rows [0, S_pad)

    itemsize = jnp.dtype(x.dtype).itemsize
    sublane = max(8, 32 // itemsize)            # 8 (f32), 16 (bf16), 32 (i8/fp8)
    TB, TS = _choose_tiles(B, Sf, Df, itemsize, sublane)
    # Batch axis innermost: pe block index is independent of b, so the pe tile
    # stays resident (no re-DMA) across consecutive batch steps.
    grid = (pl.cdiv(Sf, TS), pl.cdiv(B, TB))

    out = pl.pallas_call(
        _add_pe_kernel,
        out_shape=jax.ShapeDtypeStruct((B, Sf, Df), x.dtype),
        grid_spec=pltpu.PrefetchScalarGridSpec(
            num_scalar_prefetch=0,
            grid=grid,
            in_specs=[
                # (TB, TS, Df) tile of x; ragged edges (TS > Sf, B % TB) are masked.
                pl.BlockSpec((TB, TS, Df), lambda s, b: (b, s, 0)),
                # shared pe tile; block index independent of b -> resident across batch
                pl.BlockSpec((TS, Df), lambda s, b: (s, 0)),
            ],
            out_specs=pl.BlockSpec((TB, TS, Df), lambda s, b: (b, s, 0)),
        ),
        # Alias x -> out (same shape/dtype): no extra HBM output allocation.
        input_output_aliases={0: 0},
        compiler_params=pltpu.CompilerParams(
            # No cross-step accumulation -> both axes safely parallel (v7x megacore).
            dimension_semantics=("parallel", "parallel"),
            # Double-buffered 4 MiB x/out tiles + pe tile stay well under this
            # on every generation (v7x: 64 MiB physical per TC).
            vmem_limit_bytes=40 * 1024 * 1024,
        ),
    )(xf, pef)

    out = out.reshape(B, S_pad, D)
    if S_pad != S:
        out = out[:, :S, :]
    return out


# x is donated so the in-kernel alias (x -> out) can actually reuse the buffer.
position_embedding_forward = jax.jit(_position_embedding_fwd, donate_argnums=(0,))


def position_embedding_ref(x: jnp.ndarray, pe: jnp.ndarray) -> jnp.ndarray:
    return x + pe[None, : x.shape[1], :].astype(x.dtype)


if __name__ == "__main__":
    B, S, D = 2, 8, 32      # batch, seq_len, d_model (small demo shapes)
    MAX_LEN = 64

    key = jax.random.PRNGKey(0)
    x = jax.random.normal(key, (B, S, D), dtype=jnp.float32)

    pe = _build_pe_table(D, MAX_LEN, dtype=x.dtype)   # deterministic "buffer" from __init__

    # Reference first: x is donated to the kernel call below.
    ref = position_embedding_ref(x, pe)

    out = jax.block_until_ready(position_embedding_forward(x, pe))

    assert out.shape == (B, S, D)
    assert jnp.allclose(out, ref, atol=1e-6, rtol=1e-6), "mismatch vs reference"
    print("KERNEL_OK")
</pallas_src>

<mosaic_0001>
module attributes {stable_mosaic.version = 11 : i64} {
  func.func @_add_pe_kernel(%arg0: i32, %arg1: i32, %arg2: memref<2x8x128xf32, #tpu.memory_space<vmem>>, %arg3: memref<8x128xf32, #tpu.memory_space<vmem>>, %arg4: memref<2x8x128xf32, #tpu.memory_space<vmem>>) attributes {dimension_semantics = [#tpu.dimension_semantics<parallel>, #tpu.dimension_semantics<parallel>], iteration_bounds = array<i64: 1, 1>, scalar_prefetch = 0 : i64, scratch_operands = 0 : i64, tpu.core_type = #tpu.core_type<tc>, window_params = [{transform_indices = @transform_0, window_bounds = array<i64: 2, 8, 128>}, {transform_indices = @transform_1, window_bounds = array<i64: 8, 128>}, {transform_indices = @transform_2, window_bounds = array<i64: 2, 8, 128>}]} {
    %c0 = arith.constant 0 : index
    %c0_0 = arith.constant 0 : index
    %c0_1 = arith.constant 0 : index
    %0 = vector.load %arg2[%c0, %c0_0, %c0_1] : memref<2x8x128xf32, #tpu.memory_space<vmem>>, vector<2x8x128xf32>
    %c0_2 = arith.constant 0 : index
    %c0_3 = arith.constant 0 : index
    %1 = vector.load %arg3[%c0_2, %c0_3] : memref<8x128xf32, #tpu.memory_space<vmem>>, vector<8x128xf32>
    %2 = vector.shape_cast %1 : vector<8x128xf32> to vector<1x8x128xf32>
    %3 = vector.broadcast %2 : vector<1x8x128xf32> to vector<2x8x128xf32>
    %4 = arith.addf %0, %3 : vector<2x8x128xf32>
    %c0_4 = arith.constant 0 : index
    %c0_5 = arith.constant 0 : index
    %c0_6 = arith.constant 0 : index
    %5 = vector.load %arg4[%c0_4, %c0_5, %c0_6] : memref<2x8x128xf32, #tpu.memory_space<vmem>>, vector<2x8x128xf32>
    tpu.vector_store %arg4[%c0_4, %c0_5, %c0_6], %4 {strides = array<i32>} : memref<2x8x128xf32, #tpu.memory_space<vmem>>, vector<2x8x128xf32>,
    return
  }
  func.func @transform_0(%arg0: i32, %arg1: i32) -> (i32, i32, i32) {
    %c0_i32 = arith.constant 0 : i32
    %c0_i32_0 = arith.constant 0 : i32
    return %arg1, %arg0, %c0_i32 : i32, i32, i32
  }
  func.func @transform_1(%arg0: i32, %arg1: i32) -> (i32, i32) {
    %c0_i32 = arith.constant 0 : i32
    %c0_i32_0 = arith.constant 0 : i32
    return %arg0, %c0_i32 : i32, i32
  }
  func.func @transform_2(%arg0: i32, %arg1: i32) -> (i32, i32, i32) {
    %c0_i32 = arith.constant 0 : i32
    %c0_i32_0 = arith.constant 0 : i32
    return %arg1, %arg0, %c0_i32 : i32, i32, i32
  }
}

</mosaic_0001>

<llo_original>
// kernel: _position_embedding_fwd.1
$region0: #{_position_embedding_fwd.1}
  #allocation0 [shape = 'u32[]', space=smem, size = 0x4, offset = 0x4, fixed_abs, tag = 'smem constant byte address 0x4 - core index']
  #allocation1 [shape = 'u32[144,128]{1,0:T(1,128)}', space=vmem, size = 0x12000, scoped, tag = 'internal scratch']
  %s0 = inlined_call_operand.vmem [shape: f32[2,2,128], index: 0, kind: input, shape index: {}, may-alias: {0,2}]
  %s1 = inlined_call_operand.vmem [shape: f32[16,128], index: 1, kind: input, shape index: {}]
  %s2 = inlined_call_operand.vmem [shape: f32[2,2,128], index: 2, kind: output, shape index: {}, may-alias: {0,2}]
  %s3 = sld [smem:[#allocation0]]
  $region82: #{_position_embedding_fwd.1} parent=0
    _
  %s5 = ssub.s32 1, %s3
  %s6 = scalar_select 0, %s5, %s3
  $region1: #{_position_embedding_fwd.1} parent=0
    #allocation2 [shape = 'u8[8192]{0}', space=vmem, size = 0x2000, scoped, tag = 'input window, operand 0, single buffered']
    #allocation3 [shape = 'u8[8192]{0}', space=vmem, size = 0x2000, scoped, tag = 'output window, operand 0, single buffered']
    // Predicated region
    $region2: #{_position_embedding_fwd.1} parent=1 // pred_check
      _
    $region3: #{_position_embedding_fwd.1} parent=1 // pred_check_branch
      %8 = sbr.rel (0) target = $region5
    $region4: #{_position_embedding_fwd.1} parent=1 // pred_region
      // Predicated region
      $region6: #{_position_embedding_fwd.1} parent=4 // pred_check
        _
      $region7: #{_position_embedding_fwd.1} parent=4 // pred_check_branch
        %10 = sbr.rel (0) target = $region9
      $region8: #{_position_embedding_fwd.1} parent=4 // pred_region
        // Predicated region
        $region10: #{_position_embedding_fwd.1} parent=8 // pred_check
          _
        $region11: #{_position_embedding_fwd.1} parent=8 // pred_check_branch
          %12 = sbr.rel target = $region13
        $region12: #{_position_embedding_fwd.1} parent=8 // pred_region
          // Predicated region
          $region25: #{_position_embedding_fwd.1} parent=12 // pred_check
            _
          $region26: #{_position_embedding_fwd.1} parent=12 // pred_check_branch
            %30 = sbr.rel (0) target = $region28
          $region27: #{_position_embedding_fwd.1} parent=12 // pred_region
            %s32 = ssub.s32 4, 1
            loop: start=0, step=1, limit=1
            $region29: #{_position_embedding_fwd.1} parent=27 // loop_pre_header
              _
            $region30: #{_position_embedding_fwd.1} parent=27 // loop_header
              %s34 = sphi 0, %s38
              %p35 = scmp.ge.s32.totalorder %s34, 1
              %s39 = sphi %s0, %s0
              %s40 = sphi [#allocation2], [#allocation2]
            $region31: #{_position_embedding_fwd.1} parent=27 // loop_header_branch
              %37 = sbr.rel (%p35) target = $region35
            $region32: #{_position_embedding_fwd.1} parent=27 // loop_body
              %v41 = vld [vmem:[%s39] sm:%s32]
              %42 = vst [vmem:[%s40] sm:%s32] %v41
              %v43 = vld [vmem:[%s39 + $0x2] sm:%s32]
              %44 = vst [vmem:[%s40 + $0x8] sm:%s32] %v43
            $region33: #{_position_embedding_fwd.1} parent=27 // loop_footer
              %s38 = sadd.s32 1, %s34
            $region34: #{_position_embedding_fwd.1} parent=27 // loop_footer_branch
              %33 = sbr.rel target = $region30
            $region35: #{_position_embedding_fwd.1} parent=27 // loop_exit
              _
          $region28: #{_position_embedding_fwd.1} parent=12 // pred_fallthru
            _
        $region13: #{_position_embedding_fwd.1} parent=8 // pred_fallthru
          _
        // Predicated region
        $region14: #{_position_embedding_fwd.1} parent=8 // pred_check
          _
        $region15: #{_position_embedding_fwd.1} parent=8 // pred_check_branch
          %14 = sbr.rel (0) target = $region17
        $region16: #{_position_embedding_fwd.1} parent=8 // pred_region
          %s16 = ssub.s32 4, 1
          loop: start=0, step=1, limit=1
          $region18: #{_position_embedding_fwd.1} parent=16 // loop_pre_header
            _
          $region19: #{_position_embedding_fwd.1} parent=16 // loop_header
            %s18 = sphi 0, %s22
            %p19 = scmp.ge.s32.totalorder %s18, 1
            %s23 = sphi %s0, %s0
            %s24 = sphi [#allocation2], [#allocation2]
          $region20: #{_position_embedding_fwd.1} parent=16 // loop_header_branch
            %21 = sbr.rel (%p19) target = $region24
          $region21: #{_position_embedding_fwd.1} parent=16 // loop_body
            %v25 = vld [vmem:[%s23] sm:%s16]
            %26 = vst [vmem:[%s24] sm:%s16] %v25
            %v27 = vld [vmem:[%s23 + $0x2] sm:%s16]
            %28 = vst [vmem:[%s24 + $0x8] sm:%s16] %v27
          $region22: #{_position_embedding_fwd.1} parent=16 // loop_footer
            %s22 = sadd.s32 1, %s18
          $region23: #{_position_embedding_fwd.1} parent=16 // loop_footer_branch
            %17 = sbr.rel target = $region19
          $region24: #{_position_embedding_fwd.1} parent=16 // loop_exit
            _
        $region17: #{_position_embedding_fwd.1} parent=8 // pred_fallthru
          _
      $region9: #{_position_embedding_fwd.1} parent=4 // pred_fallthru
        _
      %45 = vnop
    $region5: #{_position_embedding_fwd.1} parent=1 // pred_fallthru
      _
    // Predicated region
    $region36: #{_position_embedding_fwd.1} parent=1 // pred_check
      _
    $region37: #{_position_embedding_fwd.1} parent=1 // pred_check_branch
      %47 = sbr.rel (0) target = $region39
    $region38: #{_position_embedding_fwd.1} parent=1 // pred_region
      _
    $region39: #{_position_embedding_fwd.1} parent=1 // pred_fallthru
      _
    // Predicated region
    $region40: #{_position_embedding_fwd.1} parent=1 // pred_check
      _
    $region41: #{_position_embedding_fwd.1} parent=1 // pred_check_branch
      %49 = sbr.rel (0) target = $region43
    $region42: #{_position_embedding_fwd.1} parent=1 // pred_region
      _
    $region43: #{_position_embedding_fwd.1} parent=1 // pred_fallthru
      _
    %v50 = vld [vmem:[#allocation2] sm:$0xff]
    %v51 = vld [vmem:[#allocation2 + $0x8] sm:$0xff]
    %v52 = vld [vmem:[%s1] sm:$0xff]
    %v53 = vadd.f32 %v50, %v52
    %v54 = vadd.f32 %v51, %v52
    %55 = vst [vmem:[#allocation3] sm:$0xff] %v53
    %56 = vst [vmem:[#allocation3 + $0x8] sm:$0xff] %v54
    // Predicated region
    $region44: #{_position_embedding_fwd.1} parent=1 // pred_check
      _
    $region45: #{_position_embedding_fwd.1} parent=1 // pred_check_branch
      %58 = sbr.rel (0) target = $region47
    $region46: #{_position_embedding_fwd.1} parent=1 // pred_region
      // Predicated region
      $region48: #{_position_embedding_fwd.1} parent=46 // pred_check
        _
      $region49: #{_position_embedding_fwd.1} parent=46 // pred_check_branch
        %60 = sbr.rel (0) target = $region51
      $region50: #{_position_embedding_fwd.1} parent=46 // pred_region
        // Predicated region
        $region52: #{_position_embedding_fwd.1} parent=50 // pred_check
          _
        $region53: #{_position_embedding_fwd.1} parent=50 // pred_check_branch
          %62 = sbr.rel target = $region55
        $region54: #{_position_embedding_fwd.1} parent=50 // pred_region
          // Predicated region
          $region67: #{_position_embedding_fwd.1} parent=54 // pred_check
            _
          $region68: #{_position_embedding_fwd.1} parent=54 // pred_check_branch
            %80 = sbr.rel (0) target = $region70
          $region69: #{_position_embedding_fwd.1} parent=54 // pred_region
            %s82 = ssub.s32 4, 1
            loop: start=0, step=1, limit=1
            $region71: #{_position_embedding_fwd.1} parent=69 // loop_pre_header
              _
            $region72: #{_position_embedding_fwd.1} parent=69 // loop_header
              %s84 = sphi 0, %s88
              %p85 = scmp.ge.s32.totalorder %s84, 1
              %s89 = sphi [#allocation3], [#allocation3]
              %s90 = sphi %s2, %s2
            $region73: #{_position_embedding_fwd.1} parent=69 // loop_header_branch
              %87 = sbr.rel (%p85) target = $region77
            $region74: #{_position_embedding_fwd.1} parent=69 // loop_body
              %v91 = vld [vmem:[%s89] sm:%s82]
              %92 = vst [vmem:[%s90] sm:%s82] %v91
              %v93 = vld [vmem:[%s89 + $0x8] sm:%s82]
              %94 = vst [vmem:[%s90 + $0x2] sm:%s82] %v93
            $region75: #{_position_embedding_fwd.1} parent=69 // loop_footer
              %s88 = sadd.s32 1, %s84
            $region76: #{_position_embedding_fwd.1} parent=69 // loop_footer_branch
              %83 = sbr.rel target = $region72
            $region77: #{_position_embedding_fwd.1} parent=69 // loop_exit
              _
          $region70: #{_position_embedding_fwd.1} parent=54 // pred_fallthru
            _
        $region55: #{_position_embedding_fwd.1} parent=50 // pred_fallthru
          _
        // Predicated region
        $region56: #{_position_embedding_fwd.1} parent=50 // pred_check
          _
        $region57: #{_position_embedding_fwd.1} parent=50 // pred_check_branch
          %64 = sbr.rel (0) target = $region59
        $region58: #{_position_embedding_fwd.1} parent=50 // pred_region
          %s66 = ssub.s32 4, 1
          loop: start=0, step=1, limit=1
          $region60: #{_position_embedding_fwd.1} parent=58 // loop_pre_header
            _
          $region61: #{_position_embedding_fwd.1} parent=58 // loop_header
            %s68 = sphi 0, %s72
            %p69 = scmp.ge.s32.totalorder %s68, 1
            %s73 = sphi [#allocation3], [#allocation3]
            %s74 = sphi %s2, %s2
          $region62: #{_position_embedding_fwd.1} parent=58 // loop_header_branch
            %71 = sbr.rel (%p69) target = $region66
          $region63: #{_position_embedding_fwd.1} parent=58 // loop_body
            %v75 = vld [vmem:[%s73] sm:%s66]
            %76 = vst [vmem:[%s74] sm:%s66] %v75
            %v77 = vld [vmem:[%s73 + $0x8] sm:%s66]
            %78 = vst [vmem:[%s74 + $0x2] sm:%s66] %v77
          $region64: #{_position_embedding_fwd.1} parent=58 // loop_footer
            %s72 = sadd.s32 1, %s68
          $region65: #{_position_embedding_fwd.1} parent=58 // loop_footer_branch
            %67 = sbr.rel target = $region61
          $region66: #{_position_embedding_fwd.1} parent=58 // loop_exit
            _
        $region59: #{_position_embedding_fwd.1} parent=50 // pred_fallthru
          _
      $region51: #{_position_embedding_fwd.1} parent=46 // pred_fallthru
        _
      %95 = vnop
    $region47: #{_position_embedding_fwd.1} parent=1 // pred_fallthru
      _
    // Predicated region
    $region78: #{_position_embedding_fwd.1} parent=1 // pred_check
      _
    $region79: #{_position_embedding_fwd.1} parent=1 // pred_check_branch
      %97 = sbr.rel (0) target = $region81
    $region80: #{_position_embedding_fwd.1} parent=1 // pred_region
      _
    $region81: #{_position_embedding_fwd.1} parent=1 // pred_fallthru
      _

</llo_original>
